<compile_context>
chip_gen: v6e
topology: v6e:2x2x1
jax: 0.10.0
libtpu: 0.0.40
codegen_flags: <defaults>
</compile_context>

<pallas_src>
import functools

import numpy as np
import jax
import jax.numpy as jnp
from jax.experimental import pallas as pl
from jax.experimental.pallas import tpu as pltpu


def _rcamsa_kernel(x_ref, wqkv_ref, bqkv_ref, pos_ref, wo_ref, bo_ref, o_ref,
                   *, n_heads, d_k, mask_bias, matmul_dtype):
    D = n_heads * d_k
    x = x_ref[0]                                                   # (T, D)

    # Fused QKV projection: one lane-dense (T, D) @ (D, 3D) MXU matmul with
    # f32 accumulation.  The softmax scale is pre-folded into the Q columns.
    qkv = jnp.dot(x, wqkv_ref[...], preferred_element_type=jnp.float32)
    qkv = qkv + bqkv_ref[...]                                      # (T, 3D) f32

    head_outs = []
    for h in range(n_heads):                                       # static -> unrolled
        q = qkv[:, h * d_k:(h + 1) * d_k].astype(matmul_dtype)             # (T, dk)
        k = qkv[:, D + h * d_k:D + (h + 1) * d_k].astype(matmul_dtype)     # (T, dk)
        v = qkv[:, 2 * D + h * d_k:2 * D + (h + 1) * d_k].astype(matmul_dtype)

        # scores[i, j] = <q_i, k_j>  (scale already folded into q).
        scores = jax.lax.dot_general(q, k, (((1,), (1,)), ((), ())),
                                     preferred_element_type=jnp.float32)   # (T, T)
        scores = scores + pos_ref[h]
        if mask_bias != 0.0:   # compile-time constant; uniform bias (reference quirk)
            scores = scores + mask_bias

        # softmax over keys, f32; denominator reciprocal goes to the EUP.
        m = jnp.max(scores, axis=-1, keepdims=True)
        e = jnp.exp(scores - m)
        probs = e * pl.reciprocal(jnp.sum(e, axis=-1, keepdims=True), approx=True)

        head_outs.append(jnp.dot(probs.astype(matmul_dtype), v,
                                 preferred_element_type=jnp.float32))      # (T, dk)

    # Heads concatenated on the lane axis -> single (T, D) @ (D, D) out-proj.
    attn_all = jnp.concatenate(head_outs, axis=-1).astype(matmul_dtype)    # (T, D)
    out = jnp.dot(attn_all, wo_ref[...], preferred_element_type=jnp.float32)
    o_ref[0] = out + bo_ref[...]


def rcamsa_forward(x, c, params, *, n_heads, max_seq_len, causal_mask=False,
                   matmul_dtype=jnp.bfloat16):
    """Pallas implementation of RCAMSA.forward(x, c). `c` is unused (matches ref)."""
    del c  # unused by the reference forward pass
    B, T, D = x.shape
    H = n_heads
    dk = D // H
    assert D % H == 0
    assert T == max_seq_len, "relative position bias requires n_token == max_seq_len"
    scale = 1.0 / np.sqrt(dk)
    mask_bias = float(causal_mask) * -1e9   # replicates `scores + self.causal_mask * -1e9`

    # --- glue (runs under jit, so it is fused/cached, not re-done per call) ---
    # Fused, scale-folded QKV parameters (Linear weights stored as (in, out)).
    w_qkv = jnp.concatenate([params["wq"] * scale, params["wk"], params["wv"]],
                            axis=1).astype(matmul_dtype)                 # (D, 3D)
    b_qkv = jnp.concatenate([params["bq"] * scale, params["bk"], params["bv"]],
                            axis=0).reshape(1, 3 * D).astype(jnp.float32)
    wo = params["wo"].astype(matmul_dtype)                               # (D, D)
    bo = params["bo"].reshape(1, D).astype(jnp.float32)

    # Relative position bias: pos[h, i, j] = table[i + (T-1-j), h].
    coords = np.arange(T)[:, None] + np.arange(T - 1, -1, -1)[None, :]
    pos = params["table"][coords.reshape(-1)].reshape(T, T, H)
    pos = jnp.transpose(pos, (2, 0, 1)).astype(jnp.float32)              # (H, T, T)

    x_mx = x.astype(matmul_dtype)

    kernel = functools.partial(_rcamsa_kernel, n_heads=H, d_k=dk,
                               mask_bias=mask_bias, matmul_dtype=matmul_dtype)

    return pl.pallas_call(
        kernel,
        out_shape=jax.ShapeDtypeStruct((B, T, D), jnp.float32),
        grid_spec=pltpu.PrefetchScalarGridSpec(
            num_scalar_prefetch=0,
            grid=(B,),
            in_specs=[
                pl.BlockSpec((1, T, D), lambda b: (b, 0, 0)),     # x (per batch)
                pl.BlockSpec((D, 3 * D), lambda b: (0, 0)),       # fused Wqkv (resident)
                pl.BlockSpec((1, 3 * D), lambda b: (0, 0)),       # fused bqkv
                pl.BlockSpec((H, T, T), lambda b: (0, 0, 0)),     # rel-pos bias (resident)
                pl.BlockSpec((D, D), lambda b: (0, 0)),           # Wo
                pl.BlockSpec((1, D), lambda b: (0, 0)),           # bo
            ],
            out_specs=pl.BlockSpec((1, T, D), lambda b: (b, 0, 0)),
        ),
        compiler_params=pltpu.CompilerParams(
            dimension_semantics=("parallel",)),
    )(x_mx, w_qkv, b_qkv, pos, wo, bo)


def rcamsa_reference(x, params, *, n_heads, max_seq_len, causal_mask=False):
    """Pure-JAX (f32) port of the PyTorch forward, for correctness check."""
    B, T, D = x.shape
    H = n_heads
    dk = D // H
    scale = 1.0 / np.sqrt(dk)

    q = x @ params["wq"] + params["bq"]
    k = x @ params["wk"] + params["bk"]
    v = x @ params["wv"] + params["bv"]
    qh = q.reshape(B, T, H, dk).transpose(0, 2, 1, 3)   # (B, H, T, dk)
    kh = k.reshape(B, T, H, dk).transpose(0, 2, 3, 1)   # (B, H, dk, T)
    vh = v.reshape(B, T, H, dk).transpose(0, 2, 1, 3)   # (B, H, T, dk)

    scores = jnp.matmul(qh * scale, kh)                 # (B, H, T, T)
    coords = np.arange(max_seq_len)[:, None] + np.arange(max_seq_len - 1, -1, -1)[None, :]
    pos = params["table"][coords.reshape(-1)].reshape(max_seq_len, max_seq_len, H)
    pos = pos.transpose(2, 0, 1)[None]                  # (1, H, T, T)
    scores = scores + pos + float(causal_mask) * -1e9

    probs = jax.nn.softmax(scores, axis=-1)
    attn = jnp.matmul(probs, vh).transpose(0, 2, 1, 3).reshape(B, T, D)
    return attn @ params["wo"] + params["bo"]


if __name__ == "__main__":
    # Small, module-consistent shapes.
    B = 2
    D_MODEL = 32
    N_HEADS = 4
    MAX_SEQ_LEN = 8          # n_token must equal max_seq_len (rel-pos bias broadcast)
    C_FEATURES = 4           # unused in forward, provided for interface parity
    T = MAX_SEQ_LEN

    key = jax.random.PRNGKey(0)
    ks = jax.random.split(key, 12)
    w_std = 1.0 / np.sqrt(D_MODEL)

    params = {
        "wq": jax.random.normal(ks[0], (D_MODEL, D_MODEL), jnp.float32) * w_std,
        "bq": jax.random.normal(ks[1], (D_MODEL,), jnp.float32) * w_std,
        "wk": jax.random.normal(ks[2], (D_MODEL, D_MODEL), jnp.float32) * w_std,
        "bk": jax.random.normal(ks[3], (D_MODEL,), jnp.float32) * w_std,
        "wv": jax.random.normal(ks[4], (D_MODEL, D_MODEL), jnp.float32) * w_std,
        "bv": jax.random.normal(ks[5], (D_MODEL,), jnp.float32) * w_std,
        "wo": jax.random.normal(ks[6], (D_MODEL, D_MODEL), jnp.float32) * w_std,
        "bo": jax.random.normal(ks[7], (D_MODEL,), jnp.float32) * w_std,
        # relative_position_embedding_table ~ trunc_normal(std=0.02)
        "table": jax.random.normal(ks[8], (2 * MAX_SEQ_LEN - 1, N_HEADS), jnp.float32) * 0.02,
    }

    x = jax.random.normal(ks[9], (B, T, D_MODEL), jnp.float32)
    c = jax.random.normal(ks[10], (B, C_FEATURES), jnp.float32)  # unused by forward

    fwd_bf16 = jax.jit(functools.partial(
        rcamsa_forward, n_heads=N_HEADS, max_seq_len=MAX_SEQ_LEN,
        causal_mask=False, matmul_dtype=jnp.bfloat16))
    fwd_f32 = jax.jit(functools.partial(
        rcamsa_forward, n_heads=N_HEADS, max_seq_len=MAX_SEQ_LEN,
        causal_mask=False, matmul_dtype=jnp.float32))

    out_bf16 = jax.block_until_ready(fwd_bf16(x, c, params))
    out_f32 = jax.block_until_ready(fwd_f32(x, c, params))

    ref = jax.block_until_ready(rcamsa_reference(
        x, params, n_heads=N_HEADS, max_seq_len=MAX_SEQ_LEN, causal_mask=False))

    assert out_bf16.shape == (B, T, D_MODEL)
    assert out_f32.shape == (B, T, D_MODEL)
    # f32-operand path: exact math up to the EUP approximate reciprocal.
    np.testing.assert_allclose(np.asarray(out_f32), np.asarray(ref),
                               rtol=1e-2, atol=1e-2)
    # bf16-MXU-operand path (f32 accumulation/softmax): bf16-level tolerance.
    np.testing.assert_allclose(np.asarray(out_bf16), np.asarray(ref),
                               rtol=6e-2, atol=6e-2)
    print("KERNEL_OK")
</pallas_src>

<mosaic_0001>
module attributes {stable_mosaic.version = 11 : i64} {
  func.func @_rcamsa_kernel(%arg0: i32, %arg1: memref<1x8x32xbf16, #tpu.memory_space<vmem>>, %arg2: memref<32x96xbf16, #tpu.memory_space<vmem>>, %arg3: memref<1x96xf32, #tpu.memory_space<vmem>>, %arg4: memref<4x8x8xf32, #tpu.memory_space<vmem>>, %arg5: memref<32x32xbf16, #tpu.memory_space<vmem>>, %arg6: memref<1x32xf32, #tpu.memory_space<vmem>>, %arg7: memref<1x8x32xf32, #tpu.memory_space<vmem>>) attributes {dimension_semantics = [#tpu.dimension_semantics<parallel>], iteration_bounds = array<i64: 2>, scalar_prefetch = 0 : i64, scratch_operands = 0 : i64, tpu.core_type = #tpu.core_type<tc>, window_params = [{transform_indices = @transform_0, window_bounds = array<i64: 1, 8, 32>}, {pipeline_mode = #tpu.pipeline_mode<synchronous>, transform_indices = @transform_1, window_bounds = array<i64: 32, 96>}, {pipeline_mode = #tpu.pipeline_mode<synchronous>, transform_indices = @transform_2, window_bounds = array<i64: 1, 96>}, {pipeline_mode = #tpu.pipeline_mode<synchronous>, transform_indices = @transform_3, window_bounds = array<i64: 4, 8, 8>}, {pipeline_mode = #tpu.pipeline_mode<synchronous>, transform_indices = @transform_4, window_bounds = array<i64: 32, 32>}, {pipeline_mode = #tpu.pipeline_mode<synchronous>, transform_indices = @transform_5, window_bounds = array<i64: 1, 32>}, {transform_indices = @transform_6, window_bounds = array<i64: 1, 8, 32>}]} {
    %c0 = arith.constant 0 : index
    %c0_0 = arith.constant 0 : index
    %c0_1 = arith.constant 0 : index
    %0 = vector.load %arg1[%c0, %c0_0, %c0_1] : memref<1x8x32xbf16, #tpu.memory_space<vmem>>, vector<1x8x32xbf16>
    %1 = vector.shape_cast %0 : vector<1x8x32xbf16> to vector<8x32xbf16>
    %c0_2 = arith.constant 0 : index
    %c0_3 = arith.constant 0 : index
    %2 = vector.load %arg2[%c0_2, %c0_3] : memref<32x96xbf16, #tpu.memory_space<vmem>>, vector<32x96xbf16>
    %cst = arith.constant dense<0.000000e+00> : vector<8x96xf32>
    %3 = tpu.matmul %1, %2, %cst {dimension_numbers = #tpu.dot_dimension_numbers<[1], [0], [0], [1], [0, 0, 1, 1], [], []>} : vector<8x32xbf16>, vector<32x96xbf16>, vector<8x96xf32> -> vector<8x96xf32>
    %c0_4 = arith.constant 0 : index
    %c0_5 = arith.constant 0 : index
    %4 = vector.load %arg3[%c0_4, %c0_5] : memref<1x96xf32, #tpu.memory_space<vmem>>, vector<1x96xf32>
    %5 = vector.broadcast %4 : vector<1x96xf32> to vector<8x96xf32>
    %6 = arith.addf %3, %5 : vector<8x96xf32>
    %7 = vector.extract_strided_slice %6 {offsets = [0, 0], sizes = [8, 8], strides = [1, 1]} : vector<8x96xf32> to vector<8x8xf32>
    %8 = arith.truncf %7 : vector<8x8xf32> to vector<8x8xbf16>
    %9 = vector.extract_strided_slice %6 {offsets = [0, 32], sizes = [8, 8], strides = [1, 1]} : vector<8x96xf32> to vector<8x8xf32>
    %10 = arith.truncf %9 : vector<8x8xf32> to vector<8x8xbf16>
    %11 = vector.extract_strided_slice %6 {offsets = [0, 64], sizes = [8, 8], strides = [1, 1]} : vector<8x96xf32> to vector<8x8xf32>
    %12 = arith.truncf %11 : vector<8x8xf32> to vector<8x8xbf16>
    %cst_6 = arith.constant dense<0.000000e+00> : vector<8x8xf32>
    %13 = tpu.matmul %8, %10, %cst_6 {dimension_numbers = #tpu.dot_dimension_numbers<[1], [1], [0], [0], [0, 0, 1, 0], [], []>} : vector<8x8xbf16>, vector<8x8xbf16>, vector<8x8xf32> -> vector<8x8xf32>
    %c0_7 = arith.constant 0 : index
    %c0_8 = arith.constant 0 : index
    %c0_9 = arith.constant 0 : index
    %14 = vector.load %arg4[%c0_7, %c0_8, %c0_9] : memref<4x8x8xf32, #tpu.memory_space<vmem>>, vector<1x8x8xf32>
    %15 = vector.shape_cast %14 : vector<1x8x8xf32> to vector<8x8xf32>
    %16 = arith.addf %13, %15 : vector<8x8xf32>
    %cst_10 = arith.constant dense<0xFF800000> : vector<8xf32>
    %17 = vector.multi_reduction <maximumf>, %16, %cst_10 [1] : vector<8x8xf32> to vector<8xf32>
    %18 = vector.shape_cast %17 : vector<8xf32> to vector<8x1xf32>
    %19 = vector.broadcast %18 : vector<8x1xf32> to vector<8x8xf32>
    %20 = arith.subf %16, %19 : vector<8x8xf32>
    %21 = math.exp %20 : vector<8x8xf32>
    %cst_11 = arith.constant dense<0.000000e+00> : vector<8xf32>
    %22 = vector.multi_reduction <add>, %21, %cst_11 [1] : vector<8x8xf32> to vector<8xf32>
    %23 = vector.shape_cast %22 : vector<8xf32> to vector<8x1xf32>
    %24 = tpu.reciprocal %23 {approx = true} : vector<8x1xf32> -> vector<8x1xf32>
    %25 = vector.broadcast %24 : vector<8x1xf32> to vector<8x8xf32>
    %26 = arith.mulf %21, %25 : vector<8x8xf32>
    %27 = arith.truncf %26 : vector<8x8xf32> to vector<8x8xbf16>
    %cst_12 = arith.constant dense<0.000000e+00> : vector<8x8xf32>
    %28 = tpu.matmul %27, %12, %cst_12 {dimension_numbers = #tpu.dot_dimension_numbers<[1], [0], [0], [1], [0, 0, 1, 1], [], []>} : vector<8x8xbf16>, vector<8x8xbf16>, vector<8x8xf32> -> vector<8x8xf32>
    %29 = vector.extract_strided_slice %6 {offsets = [0, 8], sizes = [8, 8], strides = [1, 1]} : vector<8x96xf32> to vector<8x8xf32>
    %30 = arith.truncf %29 : vector<8x8xf32> to vector<8x8xbf16>
    %31 = vector.extract_strided_slice %6 {offsets = [0, 40], sizes = [8, 8], strides = [1, 1]} : vector<8x96xf32> to vector<8x8xf32>
    %32 = arith.truncf %31 : vector<8x8xf32> to vector<8x8xbf16>
    %33 = vector.extract_strided_slice %6 {offsets = [0, 72], sizes = [8, 8], strides = [1, 1]} : vector<8x96xf32> to vector<8x8xf32>
    %34 = arith.truncf %33 : vector<8x8xf32> to vector<8x8xbf16>
    %cst_13 = arith.constant dense<0.000000e+00> : vector<8x8xf32>
    %35 = tpu.matmul %30, %32, %cst_13 {dimension_numbers = #tpu.dot_dimension_numbers<[1], [1], [0], [0], [0, 0, 1, 0], [], []>} : vector<8x8xbf16>, vector<8x8xbf16>, vector<8x8xf32> -> vector<8x8xf32>
    %c1 = arith.constant 1 : index
    %c0_14 = arith.constant 0 : index
    %c0_15 = arith.constant 0 : index
    %36 = vector.load %arg4[%c1, %c0_14, %c0_15] : memref<4x8x8xf32, #tpu.memory_space<vmem>>, vector<1x8x8xf32>
    %37 = vector.shape_cast %36 : vector<1x8x8xf32> to vector<8x8xf32>
    %38 = arith.addf %35, %37 : vector<8x8xf32>
    %cst_16 = arith.constant dense<0xFF800000> : vector<8xf32>
    %39 = vector.multi_reduction <maximumf>, %38, %cst_16 [1] : vector<8x8xf32> to vector<8xf32>
    %40 = vector.shape_cast %39 : vector<8xf32> to vector<8x1xf32>
    %41 = vector.broadcast %40 : vector<8x1xf32> to vector<8x8xf32>
    %42 = arith.subf %38, %41 : vector<8x8xf32>
    %43 = math.exp %42 : vector<8x8xf32>
    %cst_17 = arith.constant dense<0.000000e+00> : vector<8xf32>
    %44 = vector.multi_reduction <add>, %43, %cst_17 [1] : vector<8x8xf32> to vector<8xf32>
    %45 = vector.shape_cast %44 : vector<8xf32> to vector<8x1xf32>
    %46 = tpu.reciprocal %45 {approx = true} : vector<8x1xf32> -> vector<8x1xf32>
    %47 = vector.broadcast %46 : vector<8x1xf32> to vector<8x8xf32>
    %48 = arith.mulf %43, %47 : vector<8x8xf32>
    %49 = arith.truncf %48 : vector<8x8xf32> to vector<8x8xbf16>
    %cst_18 = arith.constant dense<0.000000e+00> : vector<8x8xf32>
    %50 = tpu.matmul %49, %34, %cst_18 {dimension_numbers = #tpu.dot_dimension_numbers<[1], [0], [0], [1], [0, 0, 1, 1], [], []>} : vector<8x8xbf16>, vector<8x8xbf16>, vector<8x8xf32> -> vector<8x8xf32>
    %51 = vector.extract_strided_slice %6 {offsets = [0, 16], sizes = [8, 8], strides = [1, 1]} : vector<8x96xf32> to vector<8x8xf32>
    %52 = arith.truncf %51 : vector<8x8xf32> to vector<8x8xbf16>
    %53 = vector.extract_strided_slice %6 {offsets = [0, 48], sizes = [8, 8], strides = [1, 1]} : vector<8x96xf32> to vector<8x8xf32>
    %54 = arith.truncf %53 : vector<8x8xf32> to vector<8x8xbf16>
    %55 = vector.extract_strided_slice %6 {offsets = [0, 80], sizes = [8, 8], strides = [1, 1]} : vector<8x96xf32> to vector<8x8xf32>
    %56 = arith.truncf %55 : vector<8x8xf32> to vector<8x8xbf16>
    %cst_19 = arith.constant dense<0.000000e+00> : vector<8x8xf32>
    %57 = tpu.matmul %52, %54, %cst_19 {dimension_numbers = #tpu.dot_dimension_numbers<[1], [1], [0], [0], [0, 0, 1, 0], [], []>} : vector<8x8xbf16>, vector<8x8xbf16>, vector<8x8xf32> -> vector<8x8xf32>
    %c2 = arith.constant 2 : index
    %c0_20 = arith.constant 0 : index
    %c0_21 = arith.constant 0 : index
    %58 = vector.load %arg4[%c2, %c0_20, %c0_21] : memref<4x8x8xf32, #tpu.memory_space<vmem>>, vector<1x8x8xf32>
    %59 = vector.shape_cast %58 : vector<1x8x8xf32> to vector<8x8xf32>
    %60 = arith.addf %57, %59 : vector<8x8xf32>
    %cst_22 = arith.constant dense<0xFF800000> : vector<8xf32>
    %61 = vector.multi_reduction <maximumf>, %60, %cst_22 [1] : vector<8x8xf32> to vector<8xf32>
    %62 = vector.shape_cast %61 : vector<8xf32> to vector<8x1xf32>
    %63 = vector.broadcast %62 : vector<8x1xf32> to vector<8x8xf32>
    %64 = arith.subf %60, %63 : vector<8x8xf32>
    %65 = math.exp %64 : vector<8x8xf32>
    %cst_23 = arith.constant dense<0.000000e+00> : vector<8xf32>
    %66 = vector.multi_reduction <add>, %65, %cst_23 [1] : vector<8x8xf32> to vector<8xf32>
    %67 = vector.shape_cast %66 : vector<8xf32> to vector<8x1xf32>
    %68 = tpu.reciprocal %67 {approx = true} : vector<8x1xf32> -> vector<8x1xf32>
    %69 = vector.broadcast %68 : vector<8x1xf32> to vector<8x8xf32>
    %70 = arith.mulf %65, %69 : vector<8x8xf32>
    %71 = arith.truncf %70 : vector<8x8xf32> to vector<8x8xbf16>
    %cst_24 = arith.constant dense<0.000000e+00> : vector<8x8xf32>
    %72 = tpu.matmul %71, %56, %cst_24 {dimension_numbers = #tpu.dot_dimension_numbers<[1], [0], [0], [1], [0, 0, 1, 1], [], []>} : vector<8x8xbf16>, vector<8x8xbf16>, vector<8x8xf32> -> vector<8x8xf32>
    %73 = vector.extract_strided_slice %6 {offsets = [0, 24], sizes = [8, 8], strides = [1, 1]} : vector<8x96xf32> to vector<8x8xf32>
    %74 = arith.truncf %73 : vector<8x8xf32> to vector<8x8xbf16>
    %75 = vector.extract_strided_slice %6 {offsets = [0, 56], sizes = [8, 8], strides = [1, 1]} : vector<8x96xf32> to vector<8x8xf32>
    %76 = arith.truncf %75 : vector<8x8xf32> to vector<8x8xbf16>
    %77 = vector.extract_strided_slice %6 {offsets = [0, 88], sizes = [8, 8], strides = [1, 1]} : vector<8x96xf32> to vector<8x8xf32>
    %78 = arith.truncf %77 : vector<8x8xf32> to vector<8x8xbf16>
    %cst_25 = arith.constant dense<0.000000e+00> : vector<8x8xf32>
    %79 = tpu.matmul %74, %76, %cst_25 {dimension_numbers = #tpu.dot_dimension_numbers<[1], [1], [0], [0], [0, 0, 1, 0], [], []>} : vector<8x8xbf16>, vector<8x8xbf16>, vector<8x8xf32> -> vector<8x8xf32>
    %c3 = arith.constant 3 : index
    %c0_26 = arith.constant 0 : index
    %c0_27 = arith.constant 0 : index
    %80 = vector.load %arg4[%c3, %c0_26, %c0_27] : memref<4x8x8xf32, #tpu.memory_space<vmem>>, vector<1x8x8xf32>
    %81 = vector.shape_cast %80 : vector<1x8x8xf32> to vector<8x8xf32>
    %82 = arith.addf %79, %81 : vector<8x8xf32>
    %cst_28 = arith.constant dense<0xFF800000> : vector<8xf32>
    %83 = vector.multi_reduction <maximumf>, %82, %cst_28 [1] : vector<8x8xf32> to vector<8xf32>
    %84 = vector.shape_cast %83 : vector<8xf32> to vector<8x1xf32>
    %85 = vector.broadcast %84 : vector<8x1xf32> to vector<8x8xf32>
    %86 = arith.subf %82, %85 : vector<8x8xf32>
    %87 = math.exp %86 : vector<8x8xf32>
    %cst_29 = arith.constant dense<0.000000e+00> : vector<8xf32>
    %88 = vector.multi_reduction <add>, %87, %cst_29 [1] : vector<8x8xf32> to vector<8xf32>
    %89 = vector.shape_cast %88 : vector<8xf32> to vector<8x1xf32>
    %90 = tpu.reciprocal %89 {approx = true} : vector<8x1xf32> -> vector<8x1xf32>
    %91 = vector.broadcast %90 : vector<8x1xf32> to vector<8x8xf32>
    %92 = arith.mulf %87, %91 : vector<8x8xf32>
    %93 = arith.truncf %92 : vector<8x8xf32> to vector<8x8xbf16>
    %cst_30 = arith.constant dense<0.000000e+00> : vector<8x8xf32>
    %94 = tpu.matmul %93, %78, %cst_30 {dimension_numbers = #tpu.dot_dimension_numbers<[1], [0], [0], [1], [0, 0, 1, 1], [], []>} : vector<8x8xbf16>, vector<8x8xbf16>, vector<8x8xf32> -> vector<8x8xf32>
    %95 = tpu.concatenate %28, %50, %72, %94 in 1 : vector<8x8xf32>, vector<8x8xf32>, vector<8x8xf32>, vector<8x8xf32> -> vector<8x32xf32>
    %96 = arith.truncf %95 : vector<8x32xf32> to vector<8x32xbf16>
    %c0_31 = arith.constant 0 : index
    %c0_32 = arith.constant 0 : index
    %97 = vector.load %arg5[%c0_31, %c0_32] : memref<32x32xbf16, #tpu.memory_space<vmem>>, vector<32x32xbf16>
    %cst_33 = arith.constant dense<0.000000e+00> : vector<8x32xf32>
    %98 = tpu.matmul %96, %97, %cst_33 {dimension_numbers = #tpu.dot_dimension_numbers<[1], [0], [0], [1], [0, 0, 1, 1], [], []>} : vector<8x32xbf16>, vector<32x32xbf16>, vector<8x32xf32> -> vector<8x32xf32>
    %c0_34 = arith.constant 0 : index
    %c0_35 = arith.constant 0 : index
    %99 = vector.load %arg6[%c0_34, %c0_35] : memref<1x32xf32, #tpu.memory_space<vmem>>, vector<1x32xf32>
    %100 = vector.broadcast %99 : vector<1x32xf32> to vector<8x32xf32>
    %101 = arith.addf %98, %100 : vector<8x32xf32>
    %c0_36 = arith.constant 0 : index
    %c0_37 = arith.constant 0 : index
    %c0_38 = arith.constant 0 : index
    %102 = vector.load %arg7[%c0_36, %c0_37, %c0_38] : memref<1x8x32xf32, #tpu.memory_space<vmem>>, vector<1x8x32xf32>
    %103 = vector.shape_cast %102 : vector<1x8x32xf32> to vector<8x32xf32>
    %104 = vector.shape_cast %101 : vector<8x32xf32> to vector<1x8x32xf32>
    tpu.vector_store %arg7[%c0_36, %c0_37, %c0_38], %104 {strides = array<i32>} : memref<1x8x32xf32, #tpu.memory_space<vmem>>, vector<1x8x32xf32>,
    return
  }
  func.func @transform_0(%arg0: i32) -> (i32, i32, i32) {
    %c0_i32 = arith.constant 0 : i32
    %c0_i32_0 = arith.constant 0 : i32
    %c0_i32_1 = arith.constant 0 : i32
    return %arg0, %c0_i32, %c0_i32_0 : i32, i32, i32
  }
  func.func @transform_1(%arg0: i32) -> (i32, i32) {
    %c0_i32 = arith.constant 0 : i32
    %c0_i32_0 = arith.constant 0 : i32
    %c0_i32_1 = arith.constant 0 : i32
    return %c0_i32, %c0_i32_0 : i32, i32
  }
  func.func @transform_2(%arg0: i32) -> (i32, i32) {
    %c0_i32 = arith.constant 0 : i32
    %c0_i32_0 = arith.constant 0 : i32
    %c0_i32_1 = arith.constant 0 : i32
    return %c0_i32, %c0_i32_0 : i32, i32
  }
  func.func @transform_3(%arg0: i32) -> (i32, i32, i32) {
    %c0_i32 = arith.constant 0 : i32
    %c0_i32_0 = arith.constant 0 : i32
    %c0_i32_1 = arith.constant 0 : i32
    %c0_i32_2 = arith.constant 0 : i32
    return %c0_i32, %c0_i32_0, %c0_i32_1 : i32, i32, i32
  }
  func.func @transform_4(%arg0: i32) -> (i32, i32) {
    %c0_i32 = arith.constant 0 : i32
    %c0_i32_0 = arith.constant 0 : i32
    %c0_i32_1 = arith.constant 0 : i32
    return %c0_i32, %c0_i32_0 : i32, i32
  }
  func.func @transform_5(%arg0: i32) -> (i32, i32) {
    %c0_i32 = arith.constant 0 : i32
    %c0_i32_0 = arith.constant 0 : i32
    %c0_i32_1 = arith.constant 0 : i32
    return %c0_i32, %c0_i32_0 : i32, i32
  }
  func.func @transform_6(%arg0: i32) -> (i32, i32, i32) {
    %c0_i32 = arith.constant 0 : i32
    %c0_i32_0 = arith.constant 0 : i32
    %c0_i32_1 = arith.constant 0 : i32
    return %arg0, %c0_i32, %c0_i32_0 : i32, i32, i32
  }
}

</mosaic_0001>

<llo_original>
// kernel: rcamsa_forward.1
$region0: #{rcamsa_forward.1}
  #allocation0 [shape = 'u32[]', space=smem, size = 0x4, offset = 0x4, fixed_abs, tag = 'smem constant byte address 0x4 - core index']
  #allocation1 [shape = 'u32[144,128]{1,0:T(1,128)}', space=vmem, size = 0x12000, scoped, tag = 'internal scratch']
  %s0 = inlined_call_operand.vmem [shape: bf16[2,8,32], index: 0, kind: input, shape index: {}]
  %s1 = inlined_call_operand.vmem [shape: bf16[32,96], index: 1, kind: input, shape index: {}]
  %s2 = inlined_call_operand.vmem [shape: f32[1,96], index: 2, kind: input, shape index: {}]
  %s3 = inlined_call_operand.vmem [shape: f32[4,8,8], index: 3, kind: input, shape index: {}]
  %s4 = inlined_call_operand.vmem [shape: bf16[32,32], index: 4, kind: input, shape index: {}]
  %s5 = inlined_call_operand.vmem [shape: f32[1,32], index: 5, kind: input, shape index: {}]
  %s6 = inlined_call_operand.hbm [shape: f32[2,8,32], index: 6, kind: output, shape index: {}]
  %s7 = sld [smem:[#allocation0]]
  $region57: #{rcamsa_forward.1} parent=0
    _
  %s9 = ssub.s32 1, %s7
  %s10 = scalar_select 0, %s9, %s7
  $region1: #{rcamsa_forward.1} parent=0
    #allocation2 [shape = 'u8[8192]{0}', space=vmem, size = 0x2000, scoped, tag = 'output window, operand 0']
    #allocation3 [shape = 's32[2]{0}', space=sflag, size = 0x8, scoped, tag = 'scoped memory for rcamsa_forward.1']
    %11 = vsyncpa [#allocation3], 0
    %s12 = scalar_lea.sflag [#allocation3], 1
    %13 = vsyncpa %s12, 0
    loop: start=0, step=1, limit=4
    $region2: #{rcamsa_forward.1} parent=1 // loop_pre_header
      _
    $region3: #{rcamsa_forward.1} parent=1 // loop_header
      %s15 = sphi 0, %s19
      %p16 = scmp.ge.s32.totalorder %s15, 4
      %s25 = sphi 0, %s27
      %s28 = sphi 0, %s25
      %s29 = sphi 0, %s28
      %s45 = sphi 0, %s29
      %s49 = sphi 0, %s49
      %s51 = sphi 0, %s49
      %s52 = sphi 0, %s51
      %s66 = sphi 0, %s52
      %s70 = sphi 0, %s70
      %s72 = sphi 0, %s70
      %s73 = sphi 0, %s72
      %s87 = sphi 0, %s73
      %s91 = sphi 0, %s91
      %s93 = sphi 0, %s91
      %s94 = sphi 0, %s93
      %s108 = sphi 0, %s94
      %s112 = sphi 0, %s112
      %s114 = sphi 0, %s112
      %s115 = sphi 0, %s114
      %s129 = sphi 0, %s115
      %s133 = sphi 0, %s133
      %s135 = sphi 0, %s133
      %s136 = sphi 0, %s135
      %s150 = sphi 0, %s136
      %s156 = sphi 0, %s158
      %s159 = sphi 0, %s156
      %s160 = sphi 0, %s159
      %s176 = sphi 0, %s160
    $region4: #{rcamsa_forward.1} parent=1 // loop_header_branch
      %18 = sbr.rel (%p16) target = $region8
    $region5: #{rcamsa_forward.1} parent=1 // loop_body
      %s20 = ssub.s32 %s15, 1
      %s21 = ssub.s32 %s15, 2
      %s22 = sadd.s32 %s15, 1
      %s23 = ssub.s32 %s15, %s22
      %p24 = scmp.eq.s32.totalorder %s23, 0
      %s26 = sadd.s32 %s25, 1
      %s27 = scalar_select %p24, %s25, %s26
      %p30 = pneg %p24
      %p31 = scmp.eq.s32.totalorder %s15, 1
      %p32 = por %p30, %p31
      %p33 = scmp.ne.s32.totalorder %s25, %s28
      %p34 = scmp.eq.s32.totalorder %s15, 0
      %p35 = por %p33, %p34
      %p36 = scmp.ne.s32.totalorder %s25, %s28
      %p37 = scmp.eq.s32.totalorder %s20, 1
      %p38 = por %p36, %p37
      %p39 = scmp.ne.s32.totalorder %s28, %s29
      %p40 = scmp.eq.s32.totalorder %s20, 0
      %p41 = por %p39, %p40
      %p42 = scmp.ne.s32.totalorder %s28, %s29
      %p43 = scmp.eq.s32.totalorder %s21, 1
      %p44 = por %p42, %p43
      %p46 = scmp.ne.s32.totalorder %s29, %s45
      %p47 = scmp.eq.s32.totalorder %s21, 0
      %p48 = por %p46, %p47
      %s50 = sadd.s32 %s49, 1
      %p53 = scmp.eq.s32.totalorder %s15, 1
      %p54 = scmp.ne.s32.totalorder %s49, %s51
      %p55 = scmp.eq.s32.totalorder %s15, 0
      %p56 = por %p54, %p55
      %p57 = scmp.ne.s32.totalorder %s49, %s51
      %p58 = scmp.eq.s32.totalorder %s20, 1
      %p59 = por %p57, %p58
      %p60 = scmp.ne.s32.totalorder %s51, %s52
      %p61 = scmp.eq.s32.totalorder %s20, 0
      %p62 = por %p60, %p61
      %p63 = scmp.ne.s32.totalorder %s51, %s52
      %p64 = scmp.eq.s32.totalorder %s21, 1
      %p65 = por %p63, %p64
      %p67 = scmp.ne.s32.totalorder %s52, %s66
      %p68 = scmp.eq.s32.totalorder %s21, 0
      %p69 = por %p67, %p68
      %s71 = sadd.s32 %s70, 1
      %p74 = scmp.eq.s32.totalorder %s15, 1
      %p75 = scmp.ne.s32.totalorder %s70, %s72
      %p76 = scmp.eq.s32.totalorder %s15, 0
      %p77 = por %p75, %p76
      %p78 = scmp.ne.s32.totalorder %s70, %s72
      %p79 = scmp.eq.s32.totalorder %s20, 1
      %p80 = por %p78, %p79
      %p81 = scmp.ne.s32.totalorder %s72, %s73
      %p82 = scmp.eq.s32.totalorder %s20, 0
      %p83 = por %p81, %p82
      %p84 = scmp.ne.s32.totalorder %s72, %s73
      %p85 = scmp.eq.s32.totalorder %s21, 1
      %p86 = por %p84, %p85
      %p88 = scmp.ne.s32.totalorder %s73, %s87
      %p89 = scmp.eq.s32.totalorder %s21, 0
      %p90 = por %p88, %p89
      %s92 = sadd.s32 %s91, 1
      %p95 = scmp.eq.s32.totalorder %s15, 1
      %p96 = scmp.ne.s32.totalorder %s91, %s93
      %p97 = scmp.eq.s32.totalorder %s15, 0
      %p98 = por %p96, %p97
      %p99 = scmp.ne.s32.totalorder %s91, %s93
      %p100 = scmp.eq.s32.totalorder %s20, 1
      %p101 = por %p99, %p100
      %p102 = scmp.ne.s32.totalorder %s93, %s94
      %p103 = scmp.eq.s32.totalorder %s20, 0
      %p104 = por %p102, %p103
      %p105 = scmp.ne.s32.totalorder %s93, %s94
      %p106 = scmp.eq.s32.totalorder %s21, 1
      %p107 = por %p105, %p106
      %p109 = scmp.ne.s32.totalorder %s94, %s108
      %p110 = scmp.eq.s32.totalorder %s21, 0
      %p111 = por %p109, %p110
      %s113 = sadd.s32 %s112, 1
      %p116 = scmp.eq.s32.totalorder %s15, 1
      %p117 = scmp.ne.s32.totalorder %s112, %s114
      %p118 = scmp.eq.s32.totalorder %s15, 0
      %p119 = por %p117, %p118
      %p120 = scmp.ne.s32.totalorder %s112, %s114
      %p121 = scmp.eq.s32.totalorder %s20, 1
      %p122 = por %p120, %p121
      %p123 = scmp.ne.s32.totalorder %s114, %s115
      %p124 = scmp.eq.s32.totalorder %s20, 0
      %p125 = por %p123, %p124
      %p126 = scmp.ne.s32.totalorder %s114, %s115
      %p127 = scmp.eq.s32.totalorder %s21, 1
      %p128 = por %p126, %p127
      %p130 = scmp.ne.s32.totalorder %s115, %s129
      %p131 = scmp.eq.s32.totalorder %s21, 0
      %p132 = por %p130, %p131
      %s134 = sadd.s32 %s133, 1
      %p137 = scmp.eq.s32.totalorder %s15, 1
      %p138 = scmp.ne.s32.totalorder %s133, %s135
      %p139 = scmp.eq.s32.totalorder %s15, 0
      %p140 = por %p138, %p139
      %p141 = scmp.ne.s32.totalorder %s133, %s135
      %p142 = scmp.eq.s32.totalorder %s20, 1
      %p143 = por %p141, %p142
      %p144 = scmp.ne.s32.totalorder %s135, %s136
      %p145 = scmp.eq.s32.totalorder %s20, 0
      %p146 = por %p144, %p145
      %p147 = scmp.ne.s32.totalorder %s135, %s136
      %p148 = scmp.eq.s32.totalorder %s21, 1
      %p149 = por %p147, %p148
      %p151 = scmp.ne.s32.totalorder %s136, %s150
      %p152 = scmp.eq.s32.totalorder %s21, 0
      %p153 = por %p151, %p152
      %s154 = ssub.s32 %s15, %s22
      %p155 = scmp.eq.s32.totalorder %s154, 0
      %s157 = sadd.s32 %s156, 1
      %s158 = scalar_select %p155, %s156, %s157
      %p161 = pneg %p155
      %p162 = scmp.eq.s32.totalorder %s15, 1
      %p163 = por %p161, %p162
      %p164 = scmp.ne.s32.totalorder %s156, %s159
      %p165 = scmp.eq.s32.totalorder %s15, 0
      %p166 = por %p164, %p165
      %p167 = scmp.ne.s32.totalorder %s156, %s159
      %p168 = scmp.eq.s32.totalorder %s20, 1
      %p169 = por %p167, %p168
      %p170 = scmp.ne.s32.totalorder %s159, %s160
      %p171 = scmp.eq.s32.totalorder %s20, 0
      %p172 = por %p170, %p171
      %p173 = scmp.ne.s32.totalorder %s159, %s160
      %p174 = scmp.eq.s32.totalorder %s21, 1
      %p175 = por %p173, %p174
      %p177 = scmp.ne.s32.totalorder %s160, %s176
      %p178 = scmp.eq.s32.totalorder %s21, 0
      %p179 = por %p177, %p178
      %p180 = scmp.le.s32.totalorder 1, %s15
      %p181 = scmp.lt.s32.totalorder %s15, 3
      %p182 = pnand %p180, %p181
      %p183 = pneg %p182
      // Predicated region
      $region9: #{rcamsa_forward.1} parent=5 // pred_check
        _
      $region10: #{rcamsa_forward.1} parent=5 // pred_check_branch
        %185 = sbr.rel (%p182) target = $region12
      $region11: #{rcamsa_forward.1} parent=5 // pred_region
        %s186 = ssub.s32 %s15, 1
        // Predicated region
        $region13: #{rcamsa_forward.1} parent=11 // pred_check
          %p187 = pneg %p62
        $region14: #{rcamsa_forward.1} parent=11 // pred_check_branch
          %189 = sbr.rel (%p187) target = $region16
        $region15: #{rcamsa_forward.1} parent=11 // pred_region
          _
        $region16: #{rcamsa_forward.1} parent=11 // pred_fallthru
          _
        // Predicated region
        $region17: #{rcamsa_forward.1} parent=11 // pred_check
          %p190 = pneg %p83
        $region18: #{rcamsa_forward.1} parent=11 // pred_check_branch
          %192 = sbr.rel (%p190) target = $region20
        $region19: #{rcamsa_forward.1} parent=11 // pred_region
          _
        $region20: #{rcamsa_forward.1} parent=11 // pred_fallthru
          _
        // Predicated region
        $region21: #{rcamsa_forward.1} parent=11 // pred_check
          %p193 = pneg %p104
        $region22: #{rcamsa_forward.1} parent=11 // pred_check_branch
          %195 = sbr.rel (%p193) target = $region24
        $region23: #{rcamsa_forward.1} parent=11 // pred_region
          _
        $region24: #{rcamsa_forward.1} parent=11 // pred_fallthru
          _
        // Predicated region
        $region25: #{rcamsa_forward.1} parent=11 // pred_check
          %p196 = pneg %p125
        $region26: #{rcamsa_forward.1} parent=11 // pred_check_branch
          %198 = sbr.rel (%p196) target = $region28
        $region27: #{rcamsa_forward.1} parent=11 // pred_region
          _
        $region28: #{rcamsa_forward.1} parent=11 // pred_fallthru
          _
        // Predicated region
        $region29: #{rcamsa_forward.1} parent=11 // pred_check
          %p199 = pneg %p146
        $region30: #{rcamsa_forward.1} parent=11 // pred_check_branch
          %201 = sbr.rel (%p199) target = $region32
        $region31: #{rcamsa_forward.1} parent=11 // pred_region
          _
        $region32: #{rcamsa_forward.1} parent=11 // pred_fallthru
          _
      $region12: #{rcamsa_forward.1} parent=5 // pred_fallthru
        _
      %p202 = scmp.lt.s32.totalorder %s15, 2
      // Predicated region
      $region33: #{rcamsa_forward.1} parent=5 // pred_check
        %p203 = pneg %p202
      $region34: #{rcamsa_forward.1} parent=5 // pred_check_branch
        %205 = sbr.rel (%p203) target = $region36
      $region35: #{rcamsa_forward.1} parent=5 // pred_region
        // Predicated region
        $region37: #{rcamsa_forward.1} parent=35 // pred_check
          %p206 = pneg %p35
        $region38: #{rcamsa_forward.1} parent=35 // pred_check_branch
          %208 = sbr.rel (%p206) target = $region40
        $region39: #{rcamsa_forward.1} parent=35 // pred_region
          %p209 = scmp.lt.s32.totalorder %s15, 1
          %s210 = scalar_select %p209, %s15, 1
          %s211 = smul.addr %s210, 4
          %s212 = scalar_lea.vmem %s0, %s211
        $region40: #{rcamsa_forward.1} parent=35 // pred_fallthru
          _
      $region36: #{rcamsa_forward.1} parent=5 // pred_fallthru
        _
      %p213 = scmp.le.s32.totalorder 1, %s15
      %p214 = scmp.lt.s32.totalorder %s15, 3
      %p215 = pnand %p213, %p214
      %p216 = pneg %p215
      // Predicated region
      $region41: #{rcamsa_forward.1} parent=5 // pred_check
        _
      $region42: #{rcamsa_forward.1} parent=5 // pred_check_branch
        %218 = sbr.rel (%p215) target = $region44
      $region43: #{rcamsa_forward.1} parent=5 // pred_region
        %s219 = ssub.s32 %s15, 1
        %p220 = scmp.lt.s32.totalorder %s20, 1
        %s221 = scalar_select %p220, %s20, 1
        %s222 = smul.addr %s221, 4
        %s223 = scalar_lea.vmem %s0, %s222
        %p224 = pneg %p41
        %p225 = pneg %p38
        %p226 = pneg %p62
        %p227 = pneg %p59
        %p228 = pneg %p83
        %p229 = pneg %p80
        %p230 = pneg %p104
        %p231 = pneg %p101
        %p232 = pneg %p125
        %p233 = pneg %p122
        %p234 = pneg %p146
        %p235 = pneg %p143
        %p236 = pneg %p172
        %p237 = pneg %p169
        %s238 = sand.u32 %s159, 1
        %s239 = scalar_lea.sflag [#allocation3], %s238
        %s240 = sand.u32 %s159, 1
        %s241 = smul.addr %s240, 8
        %s242 = scalar_lea.vmem [#allocation2], %s241
        %p243 = scmp.lt.s32.totalorder %s20, 1
        %s244 = scalar_select %p243, %s20, 1
        %s245 = smul.addr %s244, 4
        %s246 = scalar_lea.vmem %s0, %s245
        %v248 = vld [vmem:[%s246] sm:$0xf]
        %v249 = vld [vmem:[%s1] sm:$0xf]
        %v250 = vld [vmem:[%s1 + $0x4] sm:$0xf]
        %v251 = vld [vmem:[%s1 + $0x8] sm:$0xf]
        %v252 = vld [vmem:[%s1 + $0xc] sm:$0xf]
        %v253 = vld [vmem:[%s2] sm:$0x1]
        %v255 = vlaneseq
        %v256 = vshrl.u32 %v255, 7
        %v257 = vsub.s32 0, %v256
        %v258 = vrot.slane %v253, %v257
        %v264 = vunpack.c.l.b16 %v249
        %v265 = vunpack.c.l.b16 %v250
        %v266 = vunpack.c.l.b16 %v251
        %v267 = vunpack.c.l.b16 %v252
        %v268 = vpack.c.b16 %v265, %v264
        %v269 = vpack.c.b16 %v267, %v266
        %vm272 = vcmask 261120
        %v274 = vsel %vm272, %v248, 0
        %276 = vmatprep.subr.bf16.mxu0 0
        %277 = vmatpush1.bf16.msra.mxu0 0
        %278 = vmatprep.subr.bf16.mxu0 0
        %279 = vmatpush1.bf16.msra.mxu0 0
        %280 = vmatprep.subr.bf16.mxu0 0
        %281 = vmatpush1.bf16.msra.mxu0 0
        %282 = vmatprep.subr.bf16.mxu0 0
        %283 = vmatpush1.bf16.msra.mxu0 0
        %284 = vmatprep.subr.bf16.mxu0 0
        %285 = vmatpush1.bf16.msra.mxu0 0
        %286 = vmatprep.subr.bf16.mxu0 0
        %287 = vmatpush1.bf16.msra.mxu0 0
        %288 = vmatprep.subr.bf16.mxu0 0
        %289 = vmatpush1.bf16.msra.mxu0 %v269
        %290 = vmatprep.subr.bf16.mxu0 0
        %291 = vmatpush1.bf16.msra.mxu0 %v268
        %292 = vmatprep.subr.bf16.mxu0 0
        %293 = vmatpush2.bf16.msra.mxu0 0
        %294 = vmatprep.subr.bf16.mxu0 0
        %295 = vmatpush2.bf16.msra.mxu0 0
        %296 = vmatprep.subr.bf16.mxu0 0
        %297 = vmatpush2.bf16.msra.mxu0 0
        %298 = vmatprep.subr.bf16.mxu0 0
        %299 = vmatpush2.bf16.msra.mxu0 0
        %300 = vmatprep.subr.bf16.mxu0 0
        %301 = vmatpush2.bf16.msra.mxu0 0
        %302 = vmatprep.subr.bf16.mxu0 0
        %303 = vmatpush2.bf16.msra.mxu0 0
        %304 = vmatprep.subr.bf16.mxu0 0
        %305 = vmatpush2.bf16.msra.mxu0 0
        %306 = vmatprep.subr.bf16.mxu0 0
        %307 = vmatpush2.bf16.msra.mxu0 0
        %308 = vmatprep.mubr.bf16.mxu0 0
        %309 = vmatmul.mubr.bf16.gmra.mxu0 %v274
        %v310 = vpop.f32.mrf.mxu0
        %v311 = vadd.f32 %v258, %v310
        %v312 = vpop.f32.mrf.mxu0
        %v313 = vpop.f32.mrf.mxu0
        %v314 = vpop.f32.mrf.mxu0
        %315 = vdwg.mxu0
        %v316 = vpack.c.bf16 %v311, %v311
        %v317 = vld [vmem:[%s3] sm:$0xff]
        %319 = vrot.lane.b32.xlu0 %v316, 96
        %v320 = vpop.permute.xlu0 %319
        %vm321 = vcmask 64512
        %v323 = vsel %vm321, %v316, 0
        %v326 = vsel %vm321, %v320, 0
        %328 = vmatprep.subr.bf16.mxu0 0
        %329 = vmatpush1.bf16.xpose.msra.mxu0 0
        %330 = vmatprep.subr.bf16.mxu0 0
        %331 = vmatpush1.bf16.xpose.msra.mxu0 0
        %332 = vmatprep.subr.bf16.mxu0 0
        %333 = vmatpush1.bf16.xpose.msra.mxu0 0
        %334 = vmatprep.subr.bf16.mxu0 0
        %335 = vmatpush1.bf16.xpose.msra.mxu0 0
        %336 = vmatprep.subr.bf16.mxu0 0
        %337 = vmatpush1.bf16.xpose.msra.mxu0 0
        %338 = vmatprep.subr.bf16.mxu0 0
        %339 = vmatpush1.bf16.xpose.msra.mxu0 0
        %340 = vmatprep.subr.bf16.mxu0 0
        %341 = vmatpush1.bf16.xpose.msra.mxu0 0
        %342 = vmatprep.subr.bf16.mxu0 0
        %343 = vmatpush1.bf16.xpose.msra.mxu0 %v326
        %344 = vmatprep.subr.bf16.mxu0 0
        %345 = vmatpush2.bf16.xpose.msra.mxu0 0
        %346 = vmatprep.subr.bf16.mxu0 0
        %347 = vmatpush2.bf16.xpose.msra.mxu0 0
        %348 = vmatprep.subr.bf16.mxu0 0
        %349 = vmatpush2.bf16.xpose.msra.mxu0 0
        %350 = vmatprep.subr.bf16.mxu0 0
        %351 = vmatpush2.bf16.xpose.msra.mxu0 0
        %352 = vmatprep.subr.bf16.mxu0 0
        %353 = vmatpush2.bf16.xpose.msra.mxu0 0
        %354 = vmatprep.subr.bf16.mxu0 0
        %355 = vmatpush2.bf16.xpose.msra.mxu0 0
        %356 = vmatprep.subr.bf16.mxu0 0
        %357 = vmatpush2.bf16.xpose.msra.mxu0 0
        %358 = vmatprep.subr.bf16.mxu0 0
        %359 = vmatpush2.bf16.xpose.msra.mxu0 0
        %360 = vmatprep.mubr.bf16.mxu0 0
        %361 = vmatmul.mubr.bf16.gmra.mxu0 %v323
        %v362 = vpop.f32.mrf.mxu0
        %v363 = vadd.f32 %v317, %v362
        %v364 = vpop.f32.mrf.mxu0
        %v365 = vpop.f32.mrf.mxu0
        %v366 = vpop.f32.mrf.mxu0
        %367 = vdwg.mxu0
        %v368 = vsel %vm321, %v363, -inf
        %369 = vmax.xlane.f32.xlu0 %v368
        %v370 = vpop.xlane.xlu0 %369
        %v371 = vsub.f32 %v363, %v370
        %v372 = vmul.f32 %v371, 1.442695
        %v373 = vpow.pop %v372
        %v374 = vsel %vm321, %v373, 0.0
        %375 = vadd.xlane.f32.xlu0 %v374
        %v376 = vpop.xlane.xlu0 %375
        %v377 = vrcp.pop %v376
        %v378 = vmul.f32 %v373, %v377
        %v379 = vpack.c.bf16 %v378, %v378
        %380 = vrot.lane.b32.xlu0 %v316, 64
        %v381 = vpop.permute.xlu0 %380
        %v383 = vsel %vm321, %v379, 0
        %vm385 = vcmask 1043456
        %v387 = vsel %vm385, %v381, 0
        %389 = vmatprep.subr.bf16.mxu0 0
        %390 = vmatpush1.bf16.msra.mxu0 0
        %391 = vmatprep.subr.bf16.mxu0 0
        %392 = vmatpush1.bf16.msra.mxu0 0
        %393 = vmatprep.subr.bf16.mxu0 0
        %394 = vmatpush1.bf16.msra.mxu0 0
        %395 = vmatprep.subr.bf16.mxu0 0
        %396 = vmatpush1.bf16.msra.mxu0 0
        %397 = vmatprep.subr.bf16.mxu0 0
        %398 = vmatpush1.bf16.msra.mxu0 0
        %399 = vmatprep.subr.bf16.mxu0 0
        %400 = vmatpush1.bf16.msra.mxu0 0
        %401 = vmatprep.subr.bf16.mxu0 0
        %402 = vmatpush1.bf16.msra.mxu0 0
        %403 = vmatprep.subr.bf16.mxu0 0
        %404 = vmatpush1.bf16.msra.mxu0 %v387
        %405 = vmatprep.subr.bf16.mxu0 0
        %406 = vmatpush2.bf16.msra.mxu0 0
        %407 = vmatprep.subr.bf16.mxu0 0
        %408 = vmatpush2.bf16.msra.mxu0 0
        %409 = vmatprep.subr.bf16.mxu0 0
        %410 = vmatpush2.bf16.msra.mxu0 0
        %411 = vmatprep.subr.bf16.mxu0 0
        %412 = vmatpush2.bf16.msra.mxu0 0
        %413 = vmatprep.subr.bf16.mxu0 0
        %414 = vmatpush2.bf16.msra.mxu0 0
        %415 = vmatprep.subr.bf16.mxu0 0
        %416 = vmatpush2.bf16.msra.mxu0 0
        %417 = vmatprep.subr.bf16.mxu0 0
        %418 = vmatpush2.bf16.msra.mxu0 0
        %419 = vmatprep.subr.bf16.mxu0 0
        %420 = vmatpush2.bf16.msra.mxu0 0
        %421 = vmatprep.mubr.bf16.mxu0 0
        %422 = vmatmul.mubr.bf16.gmra.mxu0 %v383
        %v423 = vpop.f32.mrf.mxu0
        %v424 = vadd.f32 0.0, %v423
        %v425 = vpop.f32.mrf.mxu0
        %v426 = vpop.f32.mrf.mxu0
        %v427 = vpop.f32.mrf.mxu0
        %428 = vdwg.mxu0
        %s429 = scalar_lea.vmem %s3, 8
        %v430 = vld [vmem:[%s429] sm:$0xff]
        %431 = vrot.lane.b32.xlu0 %v316, 120
        %v432 = vpop.permute.xlu0 %431
        %433 = vrot.lane.b32.xlu0 %v316, 88
        %v434 = vpop.permute.xlu0 %433
        %v436 = vsel %vm321, %v432, 0
        %v439 = vsel %vm321, %v434, 0
        %441 = vmatprep.subr.bf16.mxu0 0
        %442 = vmatpush1.bf16.xpose.msra.mxu0 0
        %443 = vmatprep.subr.bf16.mxu0 0
        %444 = vmatpush1.bf16.xpose.msra.mxu0 0
        %445 = vmatprep.subr.bf16.mxu0 0
        %446 = vmatpush1.bf16.xpose.msra.mxu0 0
        %447 = vmatprep.subr.bf16.mxu0 0
        %448 = vmatpush1.bf16.xpose.msra.mxu0 0
        %449 = vmatprep.subr.bf16.mxu0 0
        %450 = vmatpush1.bf16.xpose.msra.mxu0 0
        %451 = vmatprep.subr.bf16.mxu0 0
        %452 = vmatpush1.bf16.xpose.msra.mxu0 0
        %453 = vmatprep.subr.bf16.mxu0 0
        %454 = vmatpush1.bf16.xpose.msra.mxu0 0
        %455 = vmatprep.subr.bf16.mxu0 0
        %456 = vmatpush1.bf16.xpose.msra.mxu0 %v439
        %457 = vmatprep.subr.bf16.mxu0 0
        %458 = vmatpush2.bf16.xpose.msra.mxu0 0
        %459 = vmatprep.subr.bf16.mxu0 0
        %460 = vmatpush2.bf16.xpose.msra.mxu0 0
        %461 = vmatprep.subr.bf16.mxu0 0
        %462 = vmatpush2.bf16.xpose.msra.mxu0 0
        %463 = vmatprep.subr.bf16.mxu0 0
        %464 = vmatpush2.bf16.xpose.msra.mxu0 0
        %465 = vmatprep.subr.bf16.mxu0 0
        %466 = vmatpush2.bf16.xpose.msra.mxu0 0
        %467 = vmatprep.subr.bf16.mxu0 0
        %468 = vmatpush2.bf16.xpose.msra.mxu0 0
        %469 = vmatprep.subr.bf16.mxu0 0
        %470 = vmatpush2.bf16.xpose.msra.mxu0 0
        %471 = vmatprep.subr.bf16.mxu0 0
        %472 = vmatpush2.bf16.xpose.msra.mxu0 0
        %473 = vmatprep.mubr.bf16.mxu0 0
        %474 = vmatmul.mubr.bf16.gmra.mxu0 %v436
        %v475 = vpop.f32.mrf.mxu0
        %v476 = vadd.f32 %v430, %v475
        %v477 = vpop.f32.mrf.mxu0
        %v478 = vpop.f32.mrf.mxu0
        %v479 = vpop.f32.mrf.mxu0
        %480 = vdwg.mxu0
        %v481 = vsel %vm321, %v476, -inf
        %482 = vmax.xlane.f32.xlu0 %v481
        %v483 = vpop.xlane.xlu0 %482
        %v484 = vsub.f32 %v476, %v483
        %v485 = vmul.f32 %v484, 1.442695
        %v486 = vpow.pop %v485
        %v487 = vsel %vm321, %v486, 0.0
        %488 = vadd.xlane.f32.xlu0 %v487
        %v489 = vpop.xlane.xlu0 %488
        %v490 = vrcp.pop %v489
        %v491 = vmul.f32 %v486, %v490
        %v492 = vpack.c.bf16 %v491, %v491
        %493 = vrot.lane.b32.xlu0 %v316, 56
        %v494 = vpop.permute.xlu0 %493
        %v496 = vsel %vm321, %v492, 0
        %v499 = vsel %vm385, %v494, 0
        %501 = vmatprep.subr.bf16.mxu0 0
        %502 = vmatpush1.bf16.msra.mxu0 0
        %503 = vmatprep.subr.bf16.mxu0 0
        %504 = vmatpush1.bf16.msra.mxu0 0
        %505 = vmatprep.subr.bf16.mxu0 0
        %506 = vmatpush1.bf16.msra.mxu0 0
        %507 = vmatprep.subr.bf16.mxu0 0
        %508 = vmatpush1.bf16.msra.mxu0 0
        %509 = vmatprep.subr.bf16.mxu0 0
        %510 = vmatpush1.bf16.msra.mxu0 0
        %511 = vmatprep.subr.bf16.mxu0 0
        %512 = vmatpush1.bf16.msra.mxu0 0
        %513 = vmatprep.subr.bf16.mxu0 0
        %514 = vmatpush1.bf16.msra.mxu0 0
        %515 = vmatprep.subr.bf16.mxu0 0
        %516 = vmatpush1.bf16.msra.mxu0 %v499
        %517 = vmatprep.subr.bf16.mxu0 0
        %518 = vmatpush2.bf16.msra.mxu0 0
        %519 = vmatprep.subr.bf16.mxu0 0
        %520 = vmatpush2.bf16.msra.mxu0 0
        %521 = vmatprep.subr.bf16.mxu0 0
        %522 = vmatpush2.bf16.msra.mxu0 0
        %523 = vmatprep.subr.bf16.mxu0 0
        %524 = vmatpush2.bf16.msra.mxu0 0
        %525 = vmatprep.subr.bf16.mxu0 0
        %526 = vmatpush2.bf16.msra.mxu0 0
        %527 = vmatprep.subr.bf16.mxu0 0
        %528 = vmatpush2.bf16.msra.mxu0 0
        %529 = vmatprep.subr.bf16.mxu0 0
        %530 = vmatpush2.bf16.msra.mxu0 0
        %531 = vmatprep.subr.bf16.mxu0 0
        %532 = vmatpush2.bf16.msra.mxu0 0
        %533 = vmatprep.mubr.bf16.mxu0 0
        %534 = vmatmul.mubr.bf16.gmra.mxu0 %v496
        %v535 = vpop.f32.mrf.mxu0
        %v536 = vadd.f32 0.0, %v535
        %v537 = vpop.f32.mrf.mxu0
        %v538 = vpop.f32.mrf.mxu0
        %v539 = vpop.f32.mrf.mxu0
        %540 = vdwg.mxu0
        %s541 = scalar_lea.vmem %s3, 16
        %v542 = vld [vmem:[%s541] sm:$0xff]
        %543 = vrot.lane.b32.xlu0 %v316, 112
        %v544 = vpop.permute.xlu0 %543
        %545 = vrot.lane.b32.xlu0 %v316, 80
        %v546 = vpop.permute.xlu0 %545
        %v548 = vsel %vm321, %v544, 0
        %v551 = vsel %vm321, %v546, 0
        %553 = vmatprep.subr.bf16.mxu0 0
        %554 = vmatpush1.bf16.xpose.msra.mxu0 0
        %555 = vmatprep.subr.bf16.mxu0 0
        %556 = vmatpush1.bf16.xpose.msra.mxu0 0
        %557 = vmatprep.subr.bf16.mxu0 0
        %558 = vmatpush1.bf16.xpose.msra.mxu0 0
        %559 = vmatprep.subr.bf16.mxu0 0
        %560 = vmatpush1.bf16.xpose.msra.mxu0 0
        %561 = vmatprep.subr.bf16.mxu0 0
        %562 = vmatpush1.bf16.xpose.msra.mxu0 0
        %563 = vmatprep.subr.bf16.mxu0 0
        %564 = vmatpush1.bf16.xpose.msra.mxu0 0
        %565 = vmatprep.subr.bf16.mxu0 0
        %566 = vmatpush1.bf16.xpose.msra.mxu0 0
        %567 = vmatprep.subr.bf16.mxu0 0
        %568 = vmatpush1.bf16.xpose.msra.mxu0 %v551
        %569 = vmatprep.subr.bf16.mxu0 0
        %570 = vmatpush2.bf16.xpose.msra.mxu0 0
        %571 = vmatprep.subr.bf16.mxu0 0
        %572 = vmatpush2.bf16.xpose.msra.mxu0 0
        %573 = vmatprep.subr.bf16.mxu0 0
        %574 = vmatpush2.bf16.xpose.msra.mxu0 0
        %575 = vmatprep.subr.bf16.mxu0 0
        %576 = vmatpush2.bf16.xpose.msra.mxu0 0
        %577 = vmatprep.subr.bf16.mxu0 0
        %578 = vmatpush2.bf16.xpose.msra.mxu0 0
        %579 = vmatprep.subr.bf16.mxu0 0
        %580 = vmatpush2.bf16.xpose.msra.mxu0 0
        %581 = vmatprep.subr.bf16.mxu0 0
        %582 = vmatpush2.bf16.xpose.msra.mxu0 0
        %583 = vmatprep.subr.bf16.mxu0 0
        %584 = vmatpush2.bf16.xpose.msra.mxu0 0
        %585 = vmatprep.mubr.bf16.mxu0 0
        %586 = vmatmul.mubr.bf16.gmra.mxu0 %v548
        %v587 = vpop.f32.mrf.mxu0
        %v588 = vadd.f32 %v542, %v587
        %v589 = vpop.f32.mrf.mxu0
        %v590 = vpop.f32.mrf.mxu0
        %v591 = vpop.f32.mrf.mxu0
        %592 = vdwg.mxu0
        %v593 = vsel %vm321, %v588, -inf
        %594 = vmax.xlane.f32.xlu0 %v593
        %v595 = vpop.xlane.xlu0 %594
        %v596 = vsub.f32 %v588, %v595
        %v597 = vmul.f32 %v596, 1.442695
        %v598 = vpow.pop %v597
        %v599 = vsel %vm321, %v598, 0.0
        %600 = vadd.xlane.f32.xlu0 %v599
        %v601 = vpop.xlane.xlu0 %600
        %v602 = vrcp.pop %v601
        %v603 = vmul.f32 %v598, %v602
        %v604 = vpack.c.bf16 %v603, %v603
        %605 = vrot.lane.b32.xlu0 %v316, 48
        %v606 = vpop.permute.xlu0 %605
        %v608 = vsel %vm321, %v604, 0
        %v611 = vsel %vm385, %v606, 0
        %613 = vmatprep.subr.bf16.mxu0 0
        %614 = vmatpush1.bf16.msra.mxu0 0
        %615 = vmatprep.subr.bf16.mxu0 0
        %616 = vmatpush1.bf16.msra.mxu0 0
        %617 = vmatprep.subr.bf16.mxu0 0
        %618 = vmatpush1.bf16.msra.mxu0 0
        %619 = vmatprep.subr.bf16.mxu0 0
        %620 = vmatpush1.bf16.msra.mxu0 0
        %621 = vmatprep.subr.bf16.mxu0 0
        %622 = vmatpush1.bf16.msra.mxu0 0
        %623 = vmatprep.subr.bf16.mxu0 0
        %624 = vmatpush1.bf16.msra.mxu0 0
        %625 = vmatprep.subr.bf16.mxu0 0
        %626 = vmatpush1.bf16.msra.mxu0 0
        %627 = vmatprep.subr.bf16.mxu0 0
        %628 = vmatpush1.bf16.msra.mxu0 %v611
        %629 = vmatprep.subr.bf16.mxu0 0
        %630 = vmatpush2.bf16.msra.mxu0 0
        %631 = vmatprep.subr.bf16.mxu0 0
        %632 = vmatpush2.bf16.msra.mxu0 0
        %633 = vmatprep.subr.bf16.mxu0 0
        %634 = vmatpush2.bf16.msra.mxu0 0
        %635 = vmatprep.subr.bf16.mxu0 0
        %636 = vmatpush2.bf16.msra.mxu0 0
        %637 = vmatprep.subr.bf16.mxu0 0
        %638 = vmatpush2.bf16.msra.mxu0 0
        %639 = vmatprep.subr.bf16.mxu0 0
        %640 = vmatpush2.bf16.msra.mxu0 0
        %641 = vmatprep.subr.bf16.mxu0 0
        %642 = vmatpush2.bf16.msra.mxu0 0
        %643 = vmatprep.subr.bf16.mxu0 0
        %644 = vmatpush2.bf16.msra.mxu0 0
        %645 = vmatprep.mubr.bf16.mxu0 0
        %646 = vmatmul.mubr.bf16.gmra.mxu0 %v608
        %v647 = vpop.f32.mrf.mxu0
        %v648 = vadd.f32 0.0, %v647
        %v649 = vpop.f32.mrf.mxu0
        %v650 = vpop.f32.mrf.mxu0
        %v651 = vpop.f32.mrf.mxu0
        %652 = vdwg.mxu0
        %s653 = scalar_lea.vmem %s3, 24
        %v654 = vld [vmem:[%s653] sm:$0xff]
        %655 = vrot.lane.b32.xlu0 %v316, 104
        %v656 = vpop.permute.xlu0 %655
        %657 = vrot.lane.b32.xlu0 %v316, 72
        %v658 = vpop.permute.xlu0 %657
        %v660 = vsel %vm321, %v656, 0
        %v663 = vsel %vm321, %v658, 0
        %665 = vmatprep.subr.bf16.mxu0 0
        %666 = vmatpush1.bf16.xpose.msra.mxu0 0
        %667 = vmatprep.subr.bf16.mxu0 0
        %668 = vmatpush1.bf16.xpose.msra.mxu0 0
        %669 = vmatprep.subr.bf16.mxu0 0
        %670 = vmatpush1.bf16.xpose.msra.mxu0 0
        %671 = vmatprep.subr.bf16.mxu0 0
        %672 = vmatpush1.bf16.xpose.msra.mxu0 0
        %673 = vmatprep.subr.bf16.mxu0 0
        %674 = vmatpush1.bf16.xpose.msra.mxu0 0
        %675 = vmatprep.subr.bf16.mxu0 0
        %676 = vmatpush1.bf16.xpose.msra.mxu0 0
        %677 = vmatprep.subr.bf16.mxu0 0
        %678 = vmatpush1.bf16.xpose.msra.mxu0 0
        %679 = vmatprep.subr.bf16.mxu0 0
        %680 = vmatpush1.bf16.xpose.msra.mxu0 %v663
        %681 = vmatprep.subr.bf16.mxu0 0
        %682 = vmatpush2.bf16.xpose.msra.mxu0 0
        %683 = vmatprep.subr.bf16.mxu0 0
        %684 = vmatpush2.bf16.xpose.msra.mxu0 0
        %685 = vmatprep.subr.bf16.mxu0 0
        %686 = vmatpush2.bf16.xpose.msra.mxu0 0
        %687 = vmatprep.subr.bf16.mxu0 0
        %688 = vmatpush2.bf16.xpose.msra.mxu0 0
        %689 = vmatprep.subr.bf16.mxu0 0
        %690 = vmatpush2.bf16.xpose.msra.mxu0 0
        %691 = vmatprep.subr.bf16.mxu0 0
        %692 = vmatpush2.bf16.xpose.msra.mxu0 0
        %693 = vmatprep.subr.bf16.mxu0 0
        %694 = vmatpush2.bf16.xpose.msra.mxu0 0
        %695 = vmatprep.subr.bf16.mxu0 0
        %696 = vmatpush2.bf16.xpose.msra.mxu0 0
        %697 = vmatprep.mubr.bf16.mxu0 0
        %698 = vmatmul.mubr.bf16.gmra.mxu0 %v660
        %v699 = vpop.f32.mrf.mxu0
        %v700 = vadd.f32 %v654, %v699
        %v701 = vpop.f32.mrf.mxu0
        %v702 = vpop.f32.mrf.mxu0
        %v703 = vpop.f32.mrf.mxu0
        %704 = vdwg.mxu0
        %v705 = vsel %vm321, %v700, -inf
        %706 = vmax.xlane.f32.xlu0 %v705
        %v707 = vpop.xlane.xlu0 %706
        %v708 = vsub.f32 %v700, %v707
        %v709 = vmul.f32 %v708, 1.442695
        %v710 = vpow.pop %v709
        %v711 = vsel %vm321, %v710, 0.0
        %712 = vadd.xlane.f32.xlu0 %v711
        %v713 = vpop.xlane.xlu0 %712
        %v714 = vrcp.pop %v713
        %v715 = vmul.f32 %v710, %v714
        %v716 = vpack.c.bf16 %v715, %v715
        %717 = vrot.lane.b32.xlu0 %v316, 40
        %v718 = vpop.permute.xlu0 %717
        %v720 = vsel %vm321, %v716, 0
        %v723 = vsel %vm385, %v718, 0
        %725 = vmatprep.subr.bf16.mxu0 0
        %726 = vmatpush1.bf16.msra.mxu0 0
        %727 = vmatprep.subr.bf16.mxu0 0
        %728 = vmatpush1.bf16.msra.mxu0 0
        %729 = vmatprep.subr.bf16.mxu0 0
        %730 = vmatpush1.bf16.msra.mxu0 0
        %731 = vmatprep.subr.bf16.mxu0 0
        %732 = vmatpush1.bf16.msra.mxu0 0
        %733 = vmatprep.subr.bf16.mxu0 0
        %734 = vmatpush1.bf16.msra.mxu0 0
        %735 = vmatprep.subr.bf16.mxu0 0
        %736 = vmatpush1.bf16.msra.mxu0 0
        %737 = vmatprep.subr.bf16.mxu0 0
        %738 = vmatpush1.bf16.msra.mxu0 0
        %739 = vmatprep.subr.bf16.mxu0 0
        %740 = vmatpush1.bf16.msra.mxu0 %v723
        %741 = vmatprep.subr.bf16.mxu0 0
        %742 = vmatpush2.bf16.msra.mxu0 0
        %743 = vmatprep.subr.bf16.mxu0 0
        %744 = vmatpush2.bf16.msra.mxu0 0
        %745 = vmatprep.subr.bf16.mxu0 0
        %746 = vmatpush2.bf16.msra.mxu0 0
        %747 = vmatprep.subr.bf16.mxu0 0
        %748 = vmatpush2.bf16.msra.mxu0 0
        %749 = vmatprep.subr.bf16.mxu0 0
        %750 = vmatpush2.bf16.msra.mxu0 0
        %751 = vmatprep.subr.bf16.mxu0 0
        %752 = vmatpush2.bf16.msra.mxu0 0
        %753 = vmatprep.subr.bf16.mxu0 0
        %754 = vmatpush2.bf16.msra.mxu0 0
        %755 = vmatprep.subr.bf16.mxu0 0
        %756 = vmatpush2.bf16.msra.mxu0 0
        %757 = vmatprep.mubr.bf16.mxu0 0
        %758 = vmatmul.mubr.bf16.gmra.mxu0 %v720
        %v759 = vpop.f32.mrf.mxu0
        %v760 = vadd.f32 0.0, %v759
        %v761 = vpop.f32.mrf.mxu0
        %v762 = vpop.f32.mrf.mxu0
        %v763 = vpop.f32.mrf.mxu0
        %764 = vdwg.mxu0
        %766 = vrot.lane.b32.xlu0 %v536, 8
        %v767 = vpop.permute.xlu0 %766
        %770 = vrot.lane.b32.xlu0 %v648, 16
        %v771 = vpop.permute.xlu0 %770
        %774 = vrot.lane.b32.xlu0 %v760, 24
        %v775 = vpop.permute.xlu0 %774
        %v777 = vsel %vm321, %v424, %v767
        %vm778 = vcmask 130048
        %v779 = vsel %vm778, %v777, %v771
        %vm780 = vcmask 195584
        %v781 = vsel %vm780, %v779, %v775
        %v782 = vpack.c.bf16 %v781, %v781
        %v783 = vld [vmem:[%s4] sm:$0xf]
        %v784 = vld [vmem:[%s4 + $0x4] sm:$0xf]
        %v785 = vld [vmem:[%s4 + $0x8] sm:$0xf]
        %v786 = vld [vmem:[%s4 + $0xc] sm:$0xf]
        %v787 = vld [vmem:[%s5] sm:$0x1]
        %v789 = vlaneseq
        %v790 = vshrl.u32 %v789, 7
        %v791 = vsub.s32 0, %v790
        %v792 = vrot.slane %v787, %v791
        %v798 = vunpack.c.l.b16 %v783
        %v799 = vunpack.c.l.b16 %v784
        %v800 = vunpack.c.l.b16 %v785
        %v801 = vunpack.c.l.b16 %v786
        %v802 = vpack.c.b16 %v799, %v798
        %v803 = vpack.c.b16 %v801, %v800
        %v807 = vsel %vm272, %v782, 0
        %809 = vmatprep.subr.bf16.mxu0 0
        %810 = vmatpush1.bf16.msra.mxu0 0
        %811 = vmatprep.subr.bf16.mxu0 0
        %812 = vmatpush1.bf16.msra.mxu0 0
        %813 = vmatprep.subr.bf16.mxu0 0
        %814 = vmatpush1.bf16.msra.mxu0 0
        %815 = vmatprep.subr.bf16.mxu0 0
        %816 = vmatpush1.bf16.msra.mxu0 0
        %817 = vmatprep.subr.bf16.mxu0 0
        %818 = vmatpush1.bf16.msra.mxu0 0
        %819 = vmatprep.subr.bf16.mxu0 0
        %820 = vmatpush1.bf16.msra.mxu0 0
        %821 = vmatprep.subr.bf16.mxu0 0
        %822 = vmatpush1.bf16.msra.mxu0 %v803
        %823 = vmatprep.subr.bf16.mxu0 0
        %824 = vmatpush1.bf16.msra.mxu0 %v802
        %825 = vmatprep.subr.bf16.mxu0 0
        %826 = vmatpush2.bf16.msra.mxu0 0
        %827 = vmatprep.subr.bf16.mxu0 0
        %828 = vmatpush2.bf16.msra.mxu0 0
        %829 = vmatprep.subr.bf16.mxu0 0
        %830 = vmatpush2.bf16.msra.mxu0 0
        %831 = vmatprep.subr.bf16.mxu0 0
        %832 = vmatpush2.bf16.msra.mxu0 0
        %833 = vmatprep.subr.bf16.mxu0 0
        %834 = vmatpush2.bf16.msra.mxu0 0
        %835 = vmatprep.subr.bf16.mxu0 0
        %836 = vmatpush2.bf16.msra.mxu0 0
        %837 = vmatprep.subr.bf16.mxu0 0
        %838 = vmatpush2.bf16.msra.mxu0 0
        %839 = vmatprep.subr.bf16.mxu0 0
        %840 = vmatpush2.bf16.msra.mxu0 0
        %841 = vmatprep.mubr.bf16.mxu0 0
        %842 = vmatmul.mubr.bf16.gmra.mxu0 %v807
        %v843 = vpop.f32.mrf.mxu0
        %v844 = vadd.f32 %v792, %v843
        %v845 = vpop.f32.mrf.mxu0
        %v846 = vpop.f32.mrf.mxu0
        %v847 = vpop.f32.mrf.mxu0
        %848 = vdwg.mxu0
        %849 = vst.msk [vmem:[%s242] sm:$0xff] %vm272, %v844
        %s850 = sand.u32 %s159, 1
        %s851 = scalar_lea.sflag [#allocation3], %s850
        %s852 = sand.u32 %s159, 1
        %s853 = smul.addr %s852, 8
        %s854 = scalar_lea.vmem [#allocation2], %s853
        // Predicated region
        $region45: #{rcamsa_forward.1} parent=43 // pred_check
          %p855 = pneg %p169
        $region46: #{rcamsa_forward.1} parent=43 // pred_check_branch
          %857 = sbr.rel (%p855) target = $region48
        $region47: #{rcamsa_forward.1} parent=43 // pred_region
          %s859 = ssub.s32 128, 128
          %860 = vsyncadd %s851, %s859
          %s861 = smul.addr %s20, 128
          %s862 = scalar_lea.hbm %s6, %s861
          %s864 = sshll.u32 %s854, 4
          %s865 = int_to_ptr.vmem [resolvable:$true] %s864
          %867 = dma.vmem_to_hbm [thread:$0]  %s865, 128, %s862, %s851
        $region48: #{rcamsa_forward.1} parent=43 // pred_fallthru
          _
      $region44: #{rcamsa_forward.1} parent=5 // pred_fallthru
        _
      %p868 = scmp.le.s32.totalorder 2, %s15
      // Predicated region
      $region49: #{rcamsa_forward.1} parent=5 // pred_check
        %p869 = pneg %p868
      $region50: #{rcamsa_forward.1} parent=5 // pred_check_branch
        %871 = sbr.rel (%p869) target = $region52
      $region51: #{rcamsa_forward.1} parent=5 // pred_region
        %s872 = ssub.s32 %s15, 2
        // Predicated region
        $region53: #{rcamsa_forward.1} parent=51 // pred_check
          %p873 = pneg %p175
        $region54: #{rcamsa_forward.1} parent=51 // pred_check_branch
          %875 = sbr.rel (%p873) target = $region56
        $region55: #{rcamsa_forward.1} parent=51 // pred_region
          %s876 = sand.u32 %s160, 1
          %s877 = scalar_lea.sflag [#allocation3], %s876
          %s878 = sand.u32 %s160, 1
          %s879 = smul.addr %s878, 8
          %s880 = scalar_lea.vmem [#allocation2], %s879
          %881 = dma.done %s877, 128
        $region56: #{rcamsa_forward.1} parent=51 // pred_fallthru
          _
      $region52: #{rcamsa_forward.1} parent=5 // pred_fallthru
        _
    $region6: #{rcamsa_forward.1} parent=1 // loop_footer
      %s19 = sadd.s32 1, %s15
    $region7: #{rcamsa_forward.1} parent=1 // loop_footer_branch
      %14 = sbr.rel target = $region3
    $region8: #{rcamsa_forward.1} parent=1 // loop_exit
      _
    %882 = vsyncpa [#allocation3], 1
    %s883 = scalar_lea.sflag [#allocation3], 1
    %884 = vsyncpa %s883, 1

</llo_original>
